<compile_context>
chip_gen: v6e
topology: v6e:2x2x1
jax: 0.10.0
libtpu: 0.0.40
codegen_flags: <defaults>
</compile_context>

<pallas_src>
import jax
import jax.numpy as jnp
from jax.experimental import pallas as pl
from jax.experimental.pallas import tpu as pltpu

BN_EPS = 1e-5                      # torch.nn.BatchNorm1d default
_INV_SQRT2 = 0.7071067811865476    # 1/sqrt(2) for exact-erf GELU


def _round_up(x, m):
    return ((x + m - 1) // m) * m


def _cdiv(a, b):
    return (a + b - 1) // b


def downscale_tile_kernel(w_ref, b_ref, p_ref, o_ref):
    """GELU(W_folded @ patches + bias) for one (batch, L-tile) grid cell.

    w_ref: (C_out, K)      BN-folded flattened conv weight (resident across grid)
    b_ref: (C_out, 1)      BN-folded per-output-channel bias (resident across grid)
    p_ref: (1, K, TL)      patch tile; K = C_in*factor, TL is a multiple of 128
    o_ref: (1, C_out, TL)  lane-dense output tile in the final (N, C_out, L_out) layout
    """
    y = jnp.dot(w_ref[...], p_ref[0], preferred_element_type=jnp.float32)  # (C_out, TL)
    y = y + b_ref[...]                                                     # broadcast bias
    # Exact erf GELU, matching torch.nn.GELU default.
    y = 0.5 * y * (1.0 + jax.lax.erf(y * _INV_SQRT2))
    o_ref[0] = y.astype(o_ref.dtype)


def downscale1d_with_intermediate(x, gamma, beta, conv_w, *, factor=2, tile_l=8192):
    """x: (N, C_in, L) f32; conv_w: (C_out, C_in, factor) torch Conv1d layout.

    Returns (N, C_out, L // factor), matching the PyTorch module in training mode
    (batch statistics, dropout p=0.0).
    """
    n, c_in, length = x.shape
    c_out = conv_w.shape[0]
    l_out = length // factor
    k = c_in * factor

    x32 = x.astype(jnp.float32)
    conv_w = conv_w.astype(jnp.float32)

    # ---- BatchNorm1d stats (training-mode, biased, over N and L), single fused pass ----
    mean = jnp.mean(x32, axis=(0, 2))                       # (C_in,)
    mean_sq = jnp.mean(x32 * x32, axis=(0, 2))              # (C_in,)  (same pass over x)
    var = jnp.maximum(mean_sq - mean * mean, 0.0)           # biased variance, f32
    scale = gamma.astype(jnp.float32) * jax.lax.rsqrt(var + BN_EPS)   # (C_in,)
    shift = beta.astype(jnp.float32) - mean * scale                   # (C_in,)

    # ---- Fold BN into the conv ----
    w_folded = (conv_w * scale[None, :, None]).reshape(c_out, k)      # (C_out, K), (c,f) order
    bias = jnp.einsum("ocf,c->o", conv_w, shift).reshape(c_out, 1)    # (C_out, 1)

    # ---- Dropout(p=0.0) is the identity ----

    # ---- Patch layout (N, K, L_out): patches[n, c*factor+f, t] = x[n, c, t*factor+f] ----
    patches = jnp.transpose(
        x32.reshape(n, c_in, l_out, factor), (0, 1, 3, 2)
    ).reshape(n, k, l_out)

    # ---- Tile size along L_out: big, lane-dense (multiple of 128) ----
    tl = min(_round_up(l_out, 128), max(128, (tile_l // 128) * 128))
    # Keep >=2 total grid steps when possible so the "parallel" axes actually use
    # both TensorCores on v7x (no-op on v5e/v6e).
    if n * _cdiv(l_out, tl) < 2 and tl > 128:
        tl = max(128, _round_up(_cdiv(l_out, 2), 128))

    l_pad = _round_up(l_out, tl)
    if l_pad != l_out:
        patches = jnp.pad(patches, ((0, 0), (0, 0), (0, l_pad - l_out)))

    # VMEM budget: double-buffered input + output tiles, f32 intermediate, tiny weights.
    step_bytes = 4 * (k * tl + 2 * c_out * tl + c_out * (k + 1))
    vmem_limit = int(min(32 << 20, max(8 << 20, 4 * step_bytes)))

    out = pl.pallas_call(
        downscale_tile_kernel,
        out_shape=jax.ShapeDtypeStruct((n, c_out, l_pad), jnp.float32),
        grid=(n, l_pad // tl),
        in_specs=[
            pl.BlockSpec((c_out, k), lambda i, j: (0, 0)),   # folded weight (resident)
            pl.BlockSpec((c_out, 1), lambda i, j: (0, 0)),   # folded bias (resident)
            pl.BlockSpec((1, k, tl), lambda i, j: (i, 0, j)),  # patch tile (lane-dense)
        ],
        out_specs=pl.BlockSpec((1, c_out, tl), lambda i, j: (i, 0, j)),  # final layout
        compiler_params=pltpu.CompilerParams(
            dimension_semantics=("parallel", "parallel"),
            vmem_limit_bytes=vmem_limit,
        ),
    )(w_folded, bias, patches)

    if l_pad != l_out:
        out = out[:, :, :l_out]
    return out


def reference_forward(x, gamma, beta, conv_w, *, factor=2):
    """Pure-JAX reference mirroring the PyTorch module (training-mode BN, p=0 dropout)."""
    mean = x.mean(axis=(0, 2), keepdims=True)
    var = ((x - mean) ** 2).mean(axis=(0, 2), keepdims=True)
    xh = (x - mean) / jnp.sqrt(var + BN_EPS) * gamma.reshape(1, -1, 1) + beta.reshape(1, -1, 1)
    y = jax.lax.conv_general_dilated(
        xh, conv_w, window_strides=(factor,), padding="VALID",
        dimension_numbers=("NCH", "OIH", "NCH"),
    )
    return 0.5 * y * (1.0 + jax.lax.erf(y / jnp.sqrt(2.0)))


if __name__ == "__main__":
    # Small shapes consistent with the module: (batch, in_channels, seq_len).
    # L=512 -> L_out=256 -> grid (4, 1): four pipelined grid steps.
    N, C_IN, C_OUT, L, FACTOR = 4, 8, 16, 512, 2

    key = jax.random.PRNGKey(0)
    kx, kg, kb, kw = jax.random.split(key, 4)

    x = jax.random.normal(kx, (N, C_IN, L), dtype=jnp.float32)
    gamma = 1.0 + 0.1 * jax.random.normal(kg, (C_IN,), dtype=jnp.float32)
    beta = 0.1 * jax.random.normal(kb, (C_IN,), dtype=jnp.float32)
    conv_w = jax.random.normal(kw, (C_OUT, C_IN, FACTOR), dtype=jnp.float32) * (
        1.0 / jnp.sqrt(C_IN * FACTOR)
    )

    out = downscale1d_with_intermediate(x, gamma, beta, conv_w, factor=FACTOR)
    out = jax.block_until_ready(out)

    ref = jax.block_until_ready(reference_forward(x, gamma, beta, conv_w, factor=FACTOR))
    assert out.shape == (N, C_OUT, L // FACTOR), out.shape
    max_err = float(jnp.max(jnp.abs(out - ref)))
    assert max_err < 2e-3, max_err

    print("KERNEL_OK")
</pallas_src>

<mosaic_0001>
module attributes {stable_mosaic.version = 11 : i64} {
  func.func @downscale_tile_kernel(%arg0: i32, %arg1: i32, %arg2: memref<16x16xf32, #tpu.memory_space<vmem>>, %arg3: memref<16x1xf32, #tpu.memory_space<vmem>>, %arg4: memref<1x16x256xf32, #tpu.memory_space<vmem>>, %arg5: memref<1x16x256xf32, #tpu.memory_space<vmem>>) attributes {dimension_semantics = [#tpu.dimension_semantics<parallel>, #tpu.dimension_semantics<parallel>], iteration_bounds = array<i64: 4, 1>, scalar_prefetch = 0 : i64, scratch_operands = 0 : i64, tpu.core_type = #tpu.core_type<tc>, window_params = [{pipeline_mode = #tpu.pipeline_mode<synchronous>, transform_indices = @transform_0, window_bounds = array<i64: 16, 16>}, {pipeline_mode = #tpu.pipeline_mode<synchronous>, transform_indices = @transform_1, window_bounds = array<i64: 16, 1>}, {transform_indices = @transform_2, window_bounds = array<i64: 1, 16, 256>}, {transform_indices = @transform_3, window_bounds = array<i64: 1, 16, 256>}]} {
    %c0 = arith.constant 0 : index
    %c0_0 = arith.constant 0 : index
    %0 = vector.load %arg2[%c0, %c0_0] : memref<16x16xf32, #tpu.memory_space<vmem>>, vector<16x16xf32>
    %c0_1 = arith.constant 0 : index
    %c0_2 = arith.constant 0 : index
    %c0_3 = arith.constant 0 : index
    %1 = vector.load %arg4[%c0_1, %c0_2, %c0_3] : memref<1x16x256xf32, #tpu.memory_space<vmem>>, vector<1x16x256xf32>
    %2 = vector.shape_cast %1 : vector<1x16x256xf32> to vector<16x256xf32>
    %cst = arith.constant dense<0.000000e+00> : vector<16x256xf32>
    %3 = tpu.matmul %0, %2, %cst {dimension_numbers = #tpu.dot_dimension_numbers<[1], [0], [0], [1], [0, 0, 1, 1], [], []>} : vector<16x16xf32>, vector<16x256xf32>, vector<16x256xf32> -> vector<16x256xf32>
    %c0_4 = arith.constant 0 : index
    %c0_5 = arith.constant 0 : index
    %4 = vector.load %arg3[%c0_4, %c0_5] : memref<16x1xf32, #tpu.memory_space<vmem>>, vector<16x1xf32>
    %5 = vector.broadcast %4 : vector<16x1xf32> to vector<16x256xf32>
    %6 = arith.addf %3, %5 : vector<16x256xf32>
    %cst_6 = arith.constant 5.000000e-01 : f32
    %7 = vector.broadcast %cst_6 : f32 to vector<16x256xf32>
    %8 = arith.mulf %7, %6 : vector<16x256xf32>
    %cst_7 = arith.constant 0.707106769 : f32
    %9 = vector.broadcast %cst_7 : f32 to vector<16x256xf32>
    %10 = arith.mulf %6, %9 : vector<16x256xf32>
    %11 = math.erf %10 : vector<16x256xf32>
    %cst_8 = arith.constant 1.000000e+00 : f32
    %12 = vector.broadcast %cst_8 : f32 to vector<16x256xf32>
    %13 = arith.addf %12, %11 : vector<16x256xf32>
    %14 = arith.mulf %8, %13 : vector<16x256xf32>
    %c0_9 = arith.constant 0 : index
    %c0_10 = arith.constant 0 : index
    %c0_11 = arith.constant 0 : index
    %15 = vector.load %arg5[%c0_9, %c0_10, %c0_11] : memref<1x16x256xf32, #tpu.memory_space<vmem>>, vector<1x16x256xf32>
    %16 = vector.shape_cast %15 : vector<1x16x256xf32> to vector<16x256xf32>
    %17 = vector.shape_cast %14 : vector<16x256xf32> to vector<1x16x256xf32>
    tpu.vector_store %arg5[%c0_9, %c0_10, %c0_11], %17 {strides = array<i32>} : memref<1x16x256xf32, #tpu.memory_space<vmem>>, vector<1x16x256xf32>,
    return
  }
  func.func @transform_0(%arg0: i32, %arg1: i32) -> (i32, i32) {
    %c0_i32 = arith.constant 0 : i32
    %c0_i32_0 = arith.constant 0 : i32
    %c0_i32_1 = arith.constant 0 : i32
    return %c0_i32, %c0_i32_0 : i32, i32
  }
  func.func @transform_1(%arg0: i32, %arg1: i32) -> (i32, i32) {
    %c0_i32 = arith.constant 0 : i32
    %c0_i32_0 = arith.constant 0 : i32
    %c0_i32_1 = arith.constant 0 : i32
    return %c0_i32, %c0_i32_0 : i32, i32
  }
  func.func @transform_2(%arg0: i32, %arg1: i32) -> (i32, i32, i32) {
    %c0_i32 = arith.constant 0 : i32
    %c0_i32_0 = arith.constant 0 : i32
    return %arg0, %c0_i32, %arg1 : i32, i32, i32
  }
  func.func @transform_3(%arg0: i32, %arg1: i32) -> (i32, i32, i32) {
    %c0_i32 = arith.constant 0 : i32
    %c0_i32_0 = arith.constant 0 : i32
    return %arg0, %c0_i32, %arg1 : i32, i32, i32
  }
}

</mosaic_0001>

<llo_original>
// kernel: tpu_custom_call.1
$region0: #{tpu_custom_call.1}
  #allocation0 [shape = 'u32[]', space=smem, size = 0x4, offset = 0x4, fixed_abs, tag = 'smem constant byte address 0x4 - core index']
  #allocation1 [shape = 'u32[144,128]{1,0:T(1,128)}', space=vmem, size = 0x12000, scoped, tag = 'internal scratch']
  %s0 = inlined_call_operand.vmem [shape: f32[16,16], index: 0, kind: input, shape index: {}]
  %s1 = inlined_call_operand.vmem [shape: f32[16,1], index: 1, kind: input, shape index: {}]
  %s2 = inlined_call_operand.hbm [shape: f32[4,16,256], index: 2, kind: input, shape index: {}]
  %s3 = inlined_call_operand.hbm [shape: f32[4,16,256], index: 3, kind: output, shape index: {}]
  %s4 = sld [smem:[#allocation0]]
  $region49: #{tpu_custom_call.1} parent=0
    _
  %s6 = ssub.s32 1, %s4
  %s7 = scalar_select 0, %s6, %s4
  $region1: #{tpu_custom_call.1} parent=0
    #allocation2 [shape = 'u8[32768]{0}', space=vmem, size = 0x8000, scoped, tag = 'input window, operand 2']
    #allocation3 [shape = 's32[2]{0}', space=sflag, size = 0x8, scoped, tag = 'scoped memory for tpu_custom_call.1']
    #allocation4 [shape = 's32[2]{0}', space=sflag, size = 0x8, scoped, tag = 'scoped memory for tpu_custom_call.1']
    #allocation5 [shape = 'u8[32768]{0}', space=vmem, size = 0x8000, scoped, tag = 'output window, operand 0']
    %8 = vsyncpa [#allocation3], 0
    %s9 = scalar_lea.sflag [#allocation3], 1
    %10 = vsyncpa %s9, 0
    %11 = vsyncpa [#allocation4], 0
    %s12 = scalar_lea.sflag [#allocation4], 1
    %13 = vsyncpa %s12, 0
    loop: start=0, step=1, limit=6
    $region2: #{tpu_custom_call.1} parent=1 // loop_pre_header
      _
    $region3: #{tpu_custom_call.1} parent=1 // loop_header
      %s15 = sphi 0, %s19
      %p16 = scmp.ge.s32.totalorder %s15, 6
      %s22 = sphi 0, %s34
      %s23 = sphi 0, %s30
      %s24 = sphi 0, %s22
      %s25 = sphi 0, %s23
      %s26 = sphi 0, %s24
      %s27 = sphi 0, %s25
      %s35 = sphi 0, %s35
      %s37 = sphi 0, %s35
      %s38 = sphi 0, %s37
      %s52 = sphi 0, %s38
      %s56 = sphi 0, %s56
      %s58 = sphi 0, %s56
      %s59 = sphi 0, %s58
      %s73 = sphi 0, %s59
      %s81 = sphi 0, %s83
      %s84 = sphi 0, %s81
      %s85 = sphi 0, %s84
      %s101 = sphi 0, %s85
      %s109 = sphi 0, %s111
      %s112 = sphi 0, %s109
      %s113 = sphi 0, %s112
      %s129 = sphi 0, %s113
    $region4: #{tpu_custom_call.1} parent=1 // loop_header_branch
      %18 = sbr.rel (%p16) target = $region8
    $region5: #{tpu_custom_call.1} parent=1 // loop_body
      %s20 = ssub.s32 %s15, 1
      %s21 = ssub.s32 %s15, 2
      %s28 = sadd.s32 1, %s23
      %p29 = scmp.ge.s32.totalorder %s28, 1
      %s30 = scalar_select %p29, 0, %s28
      %s31 = sadd.s32 1, %s22
      %s32 = scalar_select %p29, %s31, %s22
      %p33 = scmp.ge.s32.totalorder %s32, 4
      %s34 = scalar_select %p33, 0, %s32
      %s36 = sadd.s32 %s35, 1
      %p39 = scmp.eq.s32.totalorder %s15, 3
      %p40 = scmp.ne.s32.totalorder %s35, %s37
      %p41 = scmp.eq.s32.totalorder %s15, 0
      %p42 = por %p40, %p41
      %p43 = scmp.ne.s32.totalorder %s35, %s37
      %p44 = scmp.eq.s32.totalorder %s20, 3
      %p45 = por %p43, %p44
      %p46 = scmp.ne.s32.totalorder %s37, %s38
      %p47 = scmp.eq.s32.totalorder %s20, 0
      %p48 = por %p46, %p47
      %p49 = scmp.ne.s32.totalorder %s37, %s38
      %p50 = scmp.eq.s32.totalorder %s21, 3
      %p51 = por %p49, %p50
      %p53 = scmp.ne.s32.totalorder %s38, %s52
      %p54 = scmp.eq.s32.totalorder %s21, 0
      %p55 = por %p53, %p54
      %s57 = sadd.s32 %s56, 1
      %p60 = scmp.eq.s32.totalorder %s15, 3
      %p61 = scmp.ne.s32.totalorder %s56, %s58
      %p62 = scmp.eq.s32.totalorder %s15, 0
      %p63 = por %p61, %p62
      %p64 = scmp.ne.s32.totalorder %s56, %s58
      %p65 = scmp.eq.s32.totalorder %s20, 3
      %p66 = por %p64, %p65
      %p67 = scmp.ne.s32.totalorder %s58, %s59
      %p68 = scmp.eq.s32.totalorder %s20, 0
      %p69 = por %p67, %p68
      %p70 = scmp.ne.s32.totalorder %s58, %s59
      %p71 = scmp.eq.s32.totalorder %s21, 3
      %p72 = por %p70, %p71
      %p74 = scmp.ne.s32.totalorder %s59, %s73
      %p75 = scmp.eq.s32.totalorder %s21, 0
      %p76 = por %p74, %p75
      %s77 = ssub.s32 %s22, %s34
      %s78 = ssub.s32 %s23, %s30
      %s79 = sor.u32 %s77, %s78
      %p80 = scmp.eq.s32.totalorder %s79, 0
      %s82 = sadd.s32 %s81, 1
      %s83 = scalar_select %p80, %s81, %s82
      %p86 = pneg %p80
      %p87 = scmp.eq.s32.totalorder %s15, 3
      %p88 = por %p86, %p87
      %p89 = scmp.ne.s32.totalorder %s81, %s84
      %p90 = scmp.eq.s32.totalorder %s15, 0
      %p91 = por %p89, %p90
      %p92 = scmp.ne.s32.totalorder %s81, %s84
      %p93 = scmp.eq.s32.totalorder %s20, 3
      %p94 = por %p92, %p93
      %p95 = scmp.ne.s32.totalorder %s84, %s85
      %p96 = scmp.eq.s32.totalorder %s20, 0
      %p97 = por %p95, %p96
      %p98 = scmp.ne.s32.totalorder %s84, %s85
      %p99 = scmp.eq.s32.totalorder %s21, 3
      %p100 = por %p98, %p99
      %p102 = scmp.ne.s32.totalorder %s85, %s101
      %p103 = scmp.eq.s32.totalorder %s21, 0
      %p104 = por %p102, %p103
      %s105 = ssub.s32 %s22, %s34
      %s106 = ssub.s32 %s23, %s30
      %s107 = sor.u32 %s105, %s106
      %p108 = scmp.eq.s32.totalorder %s107, 0
      %s110 = sadd.s32 %s109, 1
      %s111 = scalar_select %p108, %s109, %s110
      %p114 = pneg %p108
      %p115 = scmp.eq.s32.totalorder %s15, 3
      %p116 = por %p114, %p115
      %p117 = scmp.ne.s32.totalorder %s109, %s112
      %p118 = scmp.eq.s32.totalorder %s15, 0
      %p119 = por %p117, %p118
      %p120 = scmp.ne.s32.totalorder %s109, %s112
      %p121 = scmp.eq.s32.totalorder %s20, 3
      %p122 = por %p120, %p121
      %p123 = scmp.ne.s32.totalorder %s112, %s113
      %p124 = scmp.eq.s32.totalorder %s20, 0
      %p125 = por %p123, %p124
      %p126 = scmp.ne.s32.totalorder %s112, %s113
      %p127 = scmp.eq.s32.totalorder %s21, 3
      %p128 = por %p126, %p127
      %p130 = scmp.ne.s32.totalorder %s113, %s129
      %p131 = scmp.eq.s32.totalorder %s21, 0
      %p132 = por %p130, %p131
      %p133 = scmp.le.s32.totalorder 1, %s15
      %p134 = scmp.lt.s32.totalorder %s15, 5
      %p135 = pnand %p133, %p134
      %p136 = pneg %p135
      // Predicated region
      $region9: #{tpu_custom_call.1} parent=5 // pred_check
        _
      $region10: #{tpu_custom_call.1} parent=5 // pred_check_branch
        %138 = sbr.rel (%p135) target = $region12
      $region11: #{tpu_custom_call.1} parent=5 // pred_region
        %s139 = ssub.s32 %s15, 1
        // Predicated region
        $region13: #{tpu_custom_call.1} parent=11 // pred_check
          %p140 = pneg %p48
        $region14: #{tpu_custom_call.1} parent=11 // pred_check_branch
          %142 = sbr.rel (%p140) target = $region16
        $region15: #{tpu_custom_call.1} parent=11 // pred_region
          _
        $region16: #{tpu_custom_call.1} parent=11 // pred_fallthru
          _
        // Predicated region
        $region17: #{tpu_custom_call.1} parent=11 // pred_check
          %p143 = pneg %p69
        $region18: #{tpu_custom_call.1} parent=11 // pred_check_branch
          %145 = sbr.rel (%p143) target = $region20
        $region19: #{tpu_custom_call.1} parent=11 // pred_region
          _
        $region20: #{tpu_custom_call.1} parent=11 // pred_fallthru
          _
      $region12: #{tpu_custom_call.1} parent=5 // pred_fallthru
        _
      %p146 = scmp.lt.s32.totalorder %s15, 4
      // Predicated region
      $region21: #{tpu_custom_call.1} parent=5 // pred_check
        %p147 = pneg %p146
      $region22: #{tpu_custom_call.1} parent=5 // pred_check_branch
        %149 = sbr.rel (%p147) target = $region24
      $region23: #{tpu_custom_call.1} parent=5 // pred_region
        // Predicated region
        $region25: #{tpu_custom_call.1} parent=23 // pred_check
          %p150 = pneg %p91
        $region26: #{tpu_custom_call.1} parent=23 // pred_check_branch
          %152 = sbr.rel (%p150) target = $region28
        $region27: #{tpu_custom_call.1} parent=23 // pred_region
          %s153 = sand.u32 %s81, 1
          %s154 = scalar_lea.sflag [#allocation3], %s153
          %s155 = sand.u32 %s81, 1
          %s156 = smul.addr %s155, 32
          %s157 = scalar_lea.vmem [#allocation2], %s156
          %s158 = smul.u32 2, %s23
          %s160 = ssub.s32 512, 512
          %161 = vsyncadd %s154, %s160
          %s162 = smul.addr %s22, 4
          %s163 = sadd.s32 %s158, %s162
          %s164 = smul.addr %s163, 128
          %s165 = scalar_lea.hbm %s2, %s164
          %s166 = sshll.u32 %s157, 4
          %s167 = int_to_ptr.vmem [resolvable:$true] %s166
          %172 = dma.hbm_to_vmem [thread:$0]  %s165, 512, %s167, %s154, 256, 256, 16
        $region28: #{tpu_custom_call.1} parent=23 // pred_fallthru
          _
      $region24: #{tpu_custom_call.1} parent=5 // pred_fallthru
        _
      %p173 = scmp.le.s32.totalorder 1, %s15
      %p174 = scmp.lt.s32.totalorder %s15, 5
      %p175 = pnand %p173, %p174
      %p176 = pneg %p175
      // Predicated region
      $region29: #{tpu_custom_call.1} parent=5 // pred_check
        _
      $region30: #{tpu_custom_call.1} parent=5 // pred_check_branch
        %178 = sbr.rel (%p175) target = $region32
      $region31: #{tpu_custom_call.1} parent=5 // pred_region
        %s179 = ssub.s32 %s15, 1
        %s180 = sand.u32 %s84, 1
        %s181 = scalar_lea.sflag [#allocation3], %s180
        %s182 = sand.u32 %s84, 1
        %s183 = smul.addr %s182, 32
        %s184 = scalar_lea.vmem [#allocation2], %s183
        // Predicated region
        $region33: #{tpu_custom_call.1} parent=31 // pred_check
          %p185 = pneg %p97
        $region34: #{tpu_custom_call.1} parent=31 // pred_check_branch
          %187 = sbr.rel (%p185) target = $region36
        $region35: #{tpu_custom_call.1} parent=31 // pred_region
          %188 = dma.done %s181, 512
        $region36: #{tpu_custom_call.1} parent=31 // pred_fallthru
          _
        %p189 = pneg %p48
        %p190 = pneg %p45
        %p191 = pneg %p69
        %p192 = pneg %p66
        %s193 = sand.u32 %s84, 1
        %s194 = scalar_lea.sflag [#allocation3], %s193
        %s195 = sand.u32 %s84, 1
        %s196 = smul.addr %s195, 32
        %s197 = scalar_lea.vmem [#allocation2], %s196
        %p198 = pneg %p97
        %p199 = pneg %p94
        %p200 = pneg %p125
        %p201 = pneg %p122
        %s202 = sand.u32 %s112, 1
        %s203 = scalar_lea.sflag [#allocation4], %s202
        %s204 = sand.u32 %s112, 1
        %s205 = smul.addr %s204, 32
        %s206 = scalar_lea.vmem [#allocation5], %s205
        %s207 = smul.u32 2, %s25
        %s208 = smul.u32 2, %s25
        %v209 = vld [vmem:[%s0] sm:$0xff]
        %v210 = vld [vmem:[%s0 + $0x8] sm:$0xff]
        %v211 = vld [vmem:[%s184] sm:$0xff]
        %v212 = vld [vmem:[%s184 + $0x8] sm:$0xff]
        %v213 = vld [vmem:[%s184 + $0x10] sm:$0xff]
        %v214 = vld [vmem:[%s184 + $0x18] sm:$0xff]
        %v215 = vld [vmem:[%s1] sm:$0xff]
        %v216 = vld [vmem:[%s1 + $0x8] sm:$0xff]
        %218 = vset.pattern.permute.xlu0 0
        %219 = vperm.xlu0 %218, %v215
        %v220 = vpop.permute.xlu0 %219
        %223 = vset.pattern.permute.xlu0 0
        %224 = vperm.xlu0 %223, %v216
        %v225 = vpop.permute.xlu0 %224
        %vm227 = vcmask 130048
        %v229 = vsel %vm227, %v209, 0
        %v232 = vsel %vm227, %v210, 0
        %234 = vmatprep.subr.mxu0 0.0
        %235 = vmatpush1.msra.mxu0 0.0
        %236 = vmatprep.subr.mxu0 0.0
        %237 = vmatpush1.msra.mxu0 0.0
        %238 = vmatprep.subr.mxu0 0.0
        %239 = vmatpush1.msra.mxu0 0.0
        %240 = vmatprep.subr.mxu0 0.0
        %241 = vmatpush1.msra.mxu0 0.0
        %242 = vmatprep.subr.mxu0 0.0
        %243 = vmatpush1.msra.mxu0 0.0
        %244 = vmatprep.subr.mxu0 0.0
        %245 = vmatpush1.msra.mxu0 0.0
        %246 = vmatprep.subr.mxu0 0.0
        %247 = vmatpush1.msra.mxu0 0.0
        %248 = vmatprep.subr.mxu0 0.0
        %249 = vmatpush1.msra.mxu0 0.0
        %250 = vmatprep.subr.mxu0 0.0
        %251 = vmatpush1.msra.mxu0 0.0
        %252 = vmatprep.subr.mxu0 0.0
        %253 = vmatpush1.msra.mxu0 0.0
        %254 = vmatprep.subr.mxu0 0.0
        %255 = vmatpush1.msra.mxu0 0.0
        %256 = vmatprep.subr.mxu0 0.0
        %257 = vmatpush1.msra.mxu0 0.0
        %258 = vmatprep.subr.mxu0 0.0
        %259 = vmatpush1.msra.mxu0 0.0
        %260 = vmatprep.subr.mxu0 0.0
        %261 = vmatpush1.msra.mxu0 0.0
        %262 = vmatprep.subr.mxu0 %v214
        %263 = vmatpush1.msra.mxu0 %v213
        %264 = vmatprep.subr.mxu0 %v212
        %265 = vmatpush1.msra.mxu0 %v211
        %266 = vmatprep.subr.mxu0 0.0
        %267 = vmatpush2.msra.mxu0 0.0
        %268 = vmatprep.subr.mxu0 0.0
        %269 = vmatpush2.msra.mxu0 0.0
        %270 = vmatprep.subr.mxu0 0.0
        %271 = vmatpush2.msra.mxu0 0.0
        %272 = vmatprep.subr.mxu0 0.0
        %273 = vmatpush2.msra.mxu0 0.0
        %274 = vmatprep.subr.mxu0 0.0
        %275 = vmatpush2.msra.mxu0 0.0
        %276 = vmatprep.subr.mxu0 0.0
        %277 = vmatpush2.msra.mxu0 0.0
        %278 = vmatprep.subr.mxu0 0.0
        %279 = vmatpush2.msra.mxu0 0.0
        %280 = vmatprep.subr.mxu0 0.0
        %281 = vmatpush2.msra.mxu0 0.0
        %282 = vmatprep.subr.mxu0 0.0
        %283 = vmatpush2.msra.mxu0 0.0
        %284 = vmatprep.subr.mxu0 0.0
        %285 = vmatpush2.msra.mxu0 0.0
        %286 = vmatprep.subr.mxu0 0.0
        %287 = vmatpush2.msra.mxu0 0.0
        %288 = vmatprep.subr.mxu0 0.0
        %289 = vmatpush2.msra.mxu0 0.0
        %290 = vmatprep.subr.mxu0 0.0
        %291 = vmatpush2.msra.mxu0 0.0
        %292 = vmatprep.subr.mxu0 0.0
        %293 = vmatpush2.msra.mxu0 0.0
        %294 = vmatprep.subr.mxu0 0.0
        %295 = vmatpush2.msra.mxu0 0.0
        %296 = vmatprep.subr.mxu0 0.0
        %297 = vmatpush2.msra.mxu0 0.0
        %298 = vmatprep.mubr.f32.mxu0 0.0
        %299 = vmatmul.mubr.f32.gmra.mxu0 %v229
        %v300 = vpop.f32.mrf.mxu0
        %v301 = vadd.f32 %v220, %v300
        %v302 = vpop.f32.mrf.mxu0
        %v303 = vadd.f32 %v220, %v302
        %304 = vmatprep.mubr.f32.mxu0 0.0
        %305 = vmatmul.mubr.f32.gmra.mxu0 %v232
        %v306 = vpop.f32.mrf.mxu0
        %v307 = vadd.f32 %v225, %v306
        %v308 = vpop.f32.mrf.mxu0
        %v309 = vadd.f32 %v225, %v308
        %310 = vdwg.mxu0
        %v311 = vmul.f32 %v301, 0.5
        %v312 = vmul.f32 %v303, 0.5
        %v313 = vmul.f32 %v307, 0.5
        %v314 = vmul.f32 %v309, 0.5
        %v315 = vmul.f32 %v301, 0.70710677
        %v316 = vmul.f32 %v303, 0.70710677
        %v317 = vmul.f32 %v307, 0.70710677
        %v318 = vmul.f32 %v309, 0.70710677
        %v319 = verf.f32.pop %v315
        %v320 = verf.f32.pop %v316
        %v321 = verf.f32.pop %v317
        %v322 = verf.f32.pop %v318
        %v323 = vadd.f32 %v319, 1.0
        %v324 = vadd.f32 %v320, 1.0
        %v325 = vadd.f32 %v321, 1.0
        %v326 = vadd.f32 %v322, 1.0
        %v327 = vmul.f32 %v311, %v323
        %v328 = vmul.f32 %v312, %v324
        %v329 = vmul.f32 %v313, %v325
        %v330 = vmul.f32 %v314, %v326
        %331 = vst [vmem:[%s206] sm:$0xff] %v327
        %332 = vst [vmem:[%s206 + $0x8] sm:$0xff] %v328
        %333 = vst [vmem:[%s206 + $0x10] sm:$0xff] %v329
        %334 = vst [vmem:[%s206 + $0x18] sm:$0xff] %v330
        %s335 = sand.u32 %s112, 1
        %s336 = scalar_lea.sflag [#allocation4], %s335
        %s337 = sand.u32 %s112, 1
        %s338 = smul.addr %s337, 32
        %s339 = scalar_lea.vmem [#allocation5], %s338
        // Predicated region
        $region37: #{tpu_custom_call.1} parent=31 // pred_check
          %p340 = pneg %p122
        $region38: #{tpu_custom_call.1} parent=31 // pred_check_branch
          %342 = sbr.rel (%p340) target = $region40
        $region39: #{tpu_custom_call.1} parent=31 // pred_region
          %s343 = smul.u32 2, %s25
          %s345 = ssub.s32 512, 512
          %346 = vsyncadd %s336, %s345
          %s347 = smul.addr %s24, 4
          %s348 = sadd.s32 %s343, %s347
          %s349 = smul.addr %s348, 128
          %s350 = scalar_lea.hbm %s3, %s349
          %s351 = sshll.u32 %s339, 4
          %s352 = int_to_ptr.vmem [resolvable:$true] %s351
          %357 = dma.vmem_to_hbm [thread:$0]  %s352, 512, %s350, %s336, 256, 256, 16
        $region40: #{tpu_custom_call.1} parent=31 // pred_fallthru
          _
      $region32: #{tpu_custom_call.1} parent=5 // pred_fallthru
        _
      %p358 = scmp.le.s32.totalorder 2, %s15
      // Predicated region
      $region41: #{tpu_custom_call.1} parent=5 // pred_check
        %p359 = pneg %p358
      $region42: #{tpu_custom_call.1} parent=5 // pred_check_branch
        %361 = sbr.rel (%p359) target = $region44
      $region43: #{tpu_custom_call.1} parent=5 // pred_region
        %s362 = ssub.s32 %s15, 2
        // Predicated region
        $region45: #{tpu_custom_call.1} parent=43 // pred_check
          %p363 = pneg %p128
        $region46: #{tpu_custom_call.1} parent=43 // pred_check_branch
          %365 = sbr.rel (%p363) target = $region48
        $region47: #{tpu_custom_call.1} parent=43 // pred_region
          %s366 = sand.u32 %s113, 1
          %s367 = scalar_lea.sflag [#allocation4], %s366
          %s368 = sand.u32 %s113, 1
          %s369 = smul.addr %s368, 32
          %s370 = scalar_lea.vmem [#allocation5], %s369
          %371 = dma.done %s367, 512
        $region48: #{tpu_custom_call.1} parent=43 // pred_fallthru
          _
      $region44: #{tpu_custom_call.1} parent=5 // pred_fallthru
        _
    $region6: #{tpu_custom_call.1} parent=1 // loop_footer
      %s19 = sadd.s32 1, %s15
    $region7: #{tpu_custom_call.1} parent=1 // loop_footer_branch
      %14 = sbr.rel target = $region3
    $region8: #{tpu_custom_call.1} parent=1 // loop_exit
      _
    %372 = vsyncpa [#allocation3], 1
    %s373 = scalar_lea.sflag [#allocation3], 1
    %374 = vsyncpa %s373, 1
    %375 = vsyncpa [#allocation4], 1
    %s376 = scalar_lea.sflag [#allocation4], 1
    %377 = vsyncpa %s376, 1

</llo_original>
